<compile_context>
chip_gen: v7x
topology: tpu7x:2x2x1
jax: 0.10.0
libtpu: 0.0.40
codegen_flags: <defaults>
</compile_context>

<pallas_src>
import jax
import jax.numpy as jnp
import numpy as np
from jax.experimental import pallas as pl
from jax.experimental.pallas import tpu as pltpu

D = 64               # input_dim (d_model), divisible by n_heads = 8
N_HEADS = 8
EMB = 32             # emb_dim -> dim_feedforward = 4 * emb_dim
FF = 4 * EMB         # 128
N_LAYERS = 2
CLS_HID = 64
N_CLASSES = 2
OUT_PAD = 8          # logits padded to 8 lanes (== full last dim of output array)
BLN_W = 128          # per-layer bias/LN slab lane width (FF = 128 is the widest row)
LN_EPS = 1e-5
MAX_BATCH_TILE = 2048
MIN_SPLIT = 256      # force >= 2 grid steps above this batch (v7x: feed both TCs)


def _layernorm(x, g, b):
    mu = jnp.mean(x, axis=-1, keepdims=True)
    var = jnp.mean(jnp.square(x - mu), axis=-1, keepdims=True)
    return (x - mu) * jax.lax.rsqrt(var + LN_EPS) * g + b


def _round_up(n, m):
    return int(pl.cdiv(n, m) * m)


def eeg_transformer_kernel(x_ref, wattn_ref, w1_ref, w2_ref, bln_ref,
                           wc1_ref, wc2_ref, misc_ref, out_ref):
    pos = misc_ref[0:1, :D]
    bc1 = misc_ref[1:2, :CLS_HID]
    bc2 = misc_ref[2:3, :OUT_PAD]

    # x.unsqueeze(1) + pos (seq dim of size 1 kept implicit);  (bt, D) f32
    x = x_ref[...] + pos

    for l in range(N_LAYERS):                                # static unroll
        bln = bln_ref[l]                                     # (8, 128) f32 bias/LN slab
        b_attn = bln[0:1, :D]
        g1, be1 = bln[1:2, :D], bln[2:3, :D]
        b1 = bln[3:4, :FF]
        b2 = bln[4:5, :D]
        g2, be2 = bln[5:6, :D], bln[6:7, :D]

        # Self-attention with sequence length 1: softmax over a single key is 1.0,
        # so attention == out_proj(V); Wv@Wo and bv@Wo+bo were pre-fused in the wrapper.
        attn = jnp.dot(x.astype(jnp.bfloat16), wattn_ref[l],
                       preferred_element_type=jnp.float32) + b_attn
        # post-norm encoder layer (norm_first=False), dropout = identity (eval).
        # Residual add kept as an exact f32 VPU add (not folded into W_attn).
        x = _layernorm(x + attn, g1, be1)
        h = jnp.maximum(jnp.dot(x.astype(jnp.bfloat16), w1_ref[l],
                                preferred_element_type=jnp.float32) + b1, 0.0)
        ff = jnp.dot(h.astype(jnp.bfloat16), w2_ref[l],
                     preferred_element_type=jnp.float32) + b2
        x = _layernorm(x + ff, g2, be2)

    # classifier head: Linear -> ReLU -> (Dropout: identity) -> Linear (8-lane padded out)
    h = jnp.maximum(jnp.dot(x.astype(jnp.bfloat16), wc1_ref[...],
                            preferred_element_type=jnp.float32) + bc1, 0.0)
    out_ref[...] = jnp.dot(h.astype(jnp.bfloat16), wc2_ref[...],
                           preferred_element_type=jnp.float32) + bc2


def init_params(key):
    kiter = iter(jax.random.split(key, 32))

    def rnd(shape, scale=0.1):
        return (scale * jax.random.normal(next(kiter), shape)).astype(jnp.float32)

    pos = jax.random.normal(next(kiter), (1, 1, D), dtype=jnp.float32)
    layers = []
    for _ in range(N_LAYERS):
        layers.append(dict(
            in_proj_w=rnd((3 * D, D)),          # torch MHA in_proj_weight layout
            in_proj_b=rnd((3 * D,)),
            out_proj_w=rnd((D, D)),
            out_proj_b=rnd((D,)),
            ln1_g=jnp.ones((D,), jnp.float32),
            ln1_b=jnp.zeros((D,), jnp.float32),
            lin1_w=rnd((FF, D)),
            lin1_b=rnd((FF,)),
            lin2_w=rnd((D, FF)),
            lin2_b=rnd((D,)),
            ln2_g=jnp.ones((D,), jnp.float32),
            ln2_b=jnp.zeros((D,), jnp.float32),
        ))
    cls = dict(
        w1=rnd((CLS_HID, D)), b1=rnd((CLS_HID,)),
        w2=rnd((N_CLASSES, CLS_HID)), b2=rnd((N_CLASSES,)),
    )
    return pos, layers, cls


def _pad_row(v, width):
    return jnp.pad(v, (0, width - v.shape[0]))


def pack_params(pos, layers, cls):
    """Fold seq-len-1 attention into one matmul and pack params into a few slabs."""
    wattn, w1s, w2s, blns = [], [], [], []
    for lp in layers:
        wv = lp['in_proj_w'][2 * D:].T                  # (D, D): x @ wv + bv == V
        bv = lp['in_proj_b'][2 * D:]
        wo = lp['out_proj_w'].T                         # (D, D)
        bo = lp['out_proj_b']
        wattn.append(wv @ wo)                           # fused: out_proj(V) weight
        b_attn = bv @ wo + bo
        w1s.append(lp['lin1_w'].T)                      # (D, FF)
        w2s.append(lp['lin2_w'].T)                      # (FF, D)
        rows = [b_attn, lp['ln1_g'], lp['ln1_b'], lp['lin1_b'],
                lp['lin2_b'], lp['ln2_g'], lp['ln2_b'],
                jnp.zeros((BLN_W,), jnp.float32)]       # pad to 8 sublanes
        blns.append(jnp.stack([_pad_row(r, BLN_W) for r in rows]))   # (8, 128)

    w_attn_all = jnp.stack(wattn).astype(jnp.bfloat16)               # (L, D, D)
    w1_all = jnp.stack(w1s).astype(jnp.bfloat16)                     # (L, D, FF)
    w2_all = jnp.stack(w2s).astype(jnp.bfloat16)                     # (L, FF, D)
    bln_all = jnp.stack(blns)                                        # (L, 8, 128) f32

    wc1 = cls['w1'].T.astype(jnp.bfloat16)                           # (D, CLS_HID)
    wc2 = jnp.pad(cls['w2'].T,
                  ((0, 0), (0, OUT_PAD - N_CLASSES))).astype(jnp.bfloat16)  # (CLS_HID, 8)

    # misc slab: pos / classifier biases, 8 sublanes x D lanes, f32
    misc_rows = [pos.reshape(D), cls['b1'], _pad_row(cls['b2'], D)]
    misc_rows += [jnp.zeros((D,), jnp.float32)] * (8 - len(misc_rows))
    misc = jnp.stack(misc_rows)                                      # (8, 64) f32

    return (w_attn_all, w1_all, w2_all, bln_all, wc1, wc2, misc)


def _tile_and_pad(n):
    """Pick (#grid steps, batch tile, padded batch) bounding padding waste to ~8*g rows."""
    g = int(pl.cdiv(n, MAX_BATCH_TILE))
    if n >= MIN_SPLIT and g < 2:
        g = 2                                  # v7x: give both TensorCores work
    bt = _round_up(int(pl.cdiv(n, g)), 8)
    n_pad = g * bt
    return g, bt, n_pad


def eeg_transformer_forward(x, pos, layers, cls):
    n = x.shape[0]
    g, bt, n_pad = _tile_and_pad(n)
    if n_pad != n:
        x = jnp.pad(x, ((0, n_pad - n), (0, 0)))     # never silently drop a tail tile

    inputs = (x,) + pack_params(pos, layers, cls)

    def rep_spec(arr):
        nd = arr.ndim
        return pl.BlockSpec(arr.shape, lambda i, _nd=nd: (0,) * _nd)

    in_specs = [pl.BlockSpec((bt, D), lambda i: (i, 0))]      # batch-tiled activations
    in_specs += [rep_spec(a) for a in inputs[1:]]             # params resident across grid
    out_spec = pl.BlockSpec((bt, OUT_PAD), lambda i: (i, 0))  # narrow (8-lane) output

    out = pl.pallas_call(
        eeg_transformer_kernel,
        out_shape=jax.ShapeDtypeStruct((n_pad, OUT_PAD), jnp.float32),
        grid=(g,),
        in_specs=in_specs,
        out_specs=out_spec,
        compiler_params=pltpu.CompilerParams(dimension_semantics=("parallel",)),
    )(*inputs)
    return out[:n, :N_CLASSES]


def reference_forward(x, pos, layers, cls):
    """Pure-JAX f32 reference with full per-head attention (matches torch semantics)."""
    b = x.shape[0]
    dh = D // N_HEADS
    h = x[:, None, :] + pos                                    # (B, 1, D)
    for lp in layers:
        qkv = h @ lp['in_proj_w'].T + lp['in_proj_b']          # (B, 1, 3D)
        q, k, v = jnp.split(qkv, 3, axis=-1)
        q = q.reshape(b, 1, N_HEADS, dh).transpose(0, 2, 1, 3)
        k = k.reshape(b, 1, N_HEADS, dh).transpose(0, 2, 1, 3)
        v = v.reshape(b, 1, N_HEADS, dh).transpose(0, 2, 1, 3)
        s = (q @ k.transpose(0, 1, 3, 2)) / jnp.sqrt(float(dh))
        a = jax.nn.softmax(s, axis=-1)
        o = (a @ v).transpose(0, 2, 1, 3).reshape(b, 1, D)
        o = o @ lp['out_proj_w'].T + lp['out_proj_b']
        h = _layernorm(h + o, lp['ln1_g'], lp['ln1_b'])
        ff = jax.nn.relu(h @ lp['lin1_w'].T + lp['lin1_b']) @ lp['lin2_w'].T + lp['lin2_b']
        h = _layernorm(h + ff, lp['ln2_g'], lp['ln2_b'])
    h = h[:, 0, :]
    h = jax.nn.relu(h @ cls['w1'].T + cls['b1'])
    return h @ cls['w2'].T + cls['b2']


if __name__ == "__main__":
    B = 8
    key = jax.random.PRNGKey(0)
    k_x, k_p = jax.random.split(key)
    x = jax.random.normal(k_x, (B, D), dtype=jnp.float32)
    pos, layers, cls = init_params(k_p)

    out = jax.block_until_ready(eeg_transformer_forward(x, pos, layers, cls))

    ref = reference_forward(x, pos, layers, cls)
    # bf16 MXU operands (f32 accumulate / LayerNorm / residual adds) -> looser-than-f32
    # but still discriminative tolerance against the pure-f32 reference.
    np.testing.assert_allclose(np.asarray(out), np.asarray(ref), rtol=3e-2, atol=3e-2)

    assert out.shape == (B, N_CLASSES)
    print("KERNEL_OK")
</pallas_src>

<mosaic_0001>
module attributes {stable_mosaic.version = 11 : i64} {
  func.func @eeg_transformer_kernel(%arg0: i32, %arg1: memref<8x64xf32, #tpu.memory_space<vmem>>, %arg2: memref<2x64x64xbf16, #tpu.memory_space<vmem>>, %arg3: memref<2x64x128xbf16, #tpu.memory_space<vmem>>, %arg4: memref<2x128x64xbf16, #tpu.memory_space<vmem>>, %arg5: memref<2x8x128xf32, #tpu.memory_space<vmem>>, %arg6: memref<64x64xbf16, #tpu.memory_space<vmem>>, %arg7: memref<64x8xbf16, #tpu.memory_space<vmem>>, %arg8: memref<8x64xf32, #tpu.memory_space<vmem>>, %arg9: memref<8x8xf32, #tpu.memory_space<vmem>>) attributes {dimension_semantics = [#tpu.dimension_semantics<parallel>], iteration_bounds = array<i64: 1>, scalar_prefetch = 0 : i64, scratch_operands = 0 : i64, tpu.core_type = #tpu.core_type<tc>, window_params = [{transform_indices = @transform_0, window_bounds = array<i64: 8, 64>}, {pipeline_mode = #tpu.pipeline_mode<synchronous>, transform_indices = @transform_1, window_bounds = array<i64: 2, 64, 64>}, {pipeline_mode = #tpu.pipeline_mode<synchronous>, transform_indices = @transform_2, window_bounds = array<i64: 2, 64, 128>}, {pipeline_mode = #tpu.pipeline_mode<synchronous>, transform_indices = @transform_3, window_bounds = array<i64: 2, 128, 64>}, {pipeline_mode = #tpu.pipeline_mode<synchronous>, transform_indices = @transform_4, window_bounds = array<i64: 2, 8, 128>}, {pipeline_mode = #tpu.pipeline_mode<synchronous>, transform_indices = @transform_5, window_bounds = array<i64: 64, 64>}, {pipeline_mode = #tpu.pipeline_mode<synchronous>, transform_indices = @transform_6, window_bounds = array<i64: 64, 8>}, {pipeline_mode = #tpu.pipeline_mode<synchronous>, transform_indices = @transform_7, window_bounds = array<i64: 8, 64>}, {transform_indices = @transform_8, window_bounds = array<i64: 8, 8>}]} {
    %c0 = arith.constant 0 : index
    %c0_0 = arith.constant 0 : index
    %0 = vector.load %arg8[%c0, %c0_0] : memref<8x64xf32, #tpu.memory_space<vmem>>, vector<1x64xf32>
    %c1 = arith.constant 1 : index
    %c0_1 = arith.constant 0 : index
    %1 = vector.load %arg8[%c1, %c0_1] : memref<8x64xf32, #tpu.memory_space<vmem>>, vector<1x64xf32>
    %c2 = arith.constant 2 : index
    %c0_2 = arith.constant 0 : index
    %2 = vector.load %arg8[%c2, %c0_2] : memref<8x64xf32, #tpu.memory_space<vmem>>, vector<1x8xf32>
    %c0_3 = arith.constant 0 : index
    %c0_4 = arith.constant 0 : index
    %3 = vector.load %arg1[%c0_3, %c0_4] : memref<8x64xf32, #tpu.memory_space<vmem>>, vector<8x64xf32>
    %4 = vector.broadcast %0 : vector<1x64xf32> to vector<8x64xf32>
    %5 = arith.addf %3, %4 : vector<8x64xf32>
    %c0_5 = arith.constant 0 : index
    %c0_6 = arith.constant 0 : index
    %c0_7 = arith.constant 0 : index
    %6 = vector.load %arg5[%c0_5, %c0_6, %c0_7] : memref<2x8x128xf32, #tpu.memory_space<vmem>>, vector<1x8x128xf32>
    %7 = vector.shape_cast %6 : vector<1x8x128xf32> to vector<8x128xf32>
    %8 = vector.extract_strided_slice %7 {offsets = [0, 0], sizes = [1, 64], strides = [1, 1]} : vector<8x128xf32> to vector<1x64xf32>
    %9 = vector.extract_strided_slice %7 {offsets = [1, 0], sizes = [1, 64], strides = [1, 1]} : vector<8x128xf32> to vector<1x64xf32>
    %10 = vector.extract_strided_slice %7 {offsets = [2, 0], sizes = [1, 64], strides = [1, 1]} : vector<8x128xf32> to vector<1x64xf32>
    %11 = vector.extract_strided_slice %7 {offsets = [3, 0], sizes = [1, 128], strides = [1, 1]} : vector<8x128xf32> to vector<1x128xf32>
    %12 = vector.extract_strided_slice %7 {offsets = [4, 0], sizes = [1, 64], strides = [1, 1]} : vector<8x128xf32> to vector<1x64xf32>
    %13 = vector.extract_strided_slice %7 {offsets = [5, 0], sizes = [1, 64], strides = [1, 1]} : vector<8x128xf32> to vector<1x64xf32>
    %14 = vector.extract_strided_slice %7 {offsets = [6, 0], sizes = [1, 64], strides = [1, 1]} : vector<8x128xf32> to vector<1x64xf32>
    %15 = arith.truncf %5 : vector<8x64xf32> to vector<8x64xbf16>
    %c0_8 = arith.constant 0 : index
    %c0_9 = arith.constant 0 : index
    %c0_10 = arith.constant 0 : index
    %16 = vector.load %arg2[%c0_8, %c0_9, %c0_10] : memref<2x64x64xbf16, #tpu.memory_space<vmem>>, vector<1x64x64xbf16>
    %17 = vector.shape_cast %16 : vector<1x64x64xbf16> to vector<64x64xbf16>
    %cst = arith.constant dense<0.000000e+00> : vector<8x64xf32>
    %18 = tpu.matmul %15, %17, %cst {dimension_numbers = #tpu.dot_dimension_numbers<[1], [0], [0], [1], [0, 0, 1, 1], [], []>} : vector<8x64xbf16>, vector<64x64xbf16>, vector<8x64xf32> -> vector<8x64xf32>
    %19 = vector.broadcast %8 : vector<1x64xf32> to vector<8x64xf32>
    %20 = arith.addf %18, %19 : vector<8x64xf32>
    %21 = arith.addf %5, %20 : vector<8x64xf32>
    %cst_11 = arith.constant dense<0.000000e+00> : vector<8xf32>
    %22 = vector.multi_reduction <add>, %21, %cst_11 [1] : vector<8x64xf32> to vector<8xf32>
    %23 = vector.shape_cast %22 : vector<8xf32> to vector<8x1xf32>
    %cst_12 = arith.constant 6.400000e+01 : f32
    %24 = vector.broadcast %cst_12 : f32 to vector<8x1xf32>
    %25 = arith.divf %23, %24 : vector<8x1xf32>
    %26 = vector.broadcast %25 : vector<8x1xf32> to vector<8x64xf32>
    %27 = arith.subf %21, %26 : vector<8x64xf32>
    %28 = arith.mulf %27, %27 : vector<8x64xf32>
    %cst_13 = arith.constant dense<0.000000e+00> : vector<8xf32>
    %29 = vector.multi_reduction <add>, %28, %cst_13 [1] : vector<8x64xf32> to vector<8xf32>
    %30 = vector.shape_cast %29 : vector<8xf32> to vector<8x1xf32>
    %cst_14 = arith.constant 6.400000e+01 : f32
    %31 = vector.broadcast %cst_14 : f32 to vector<8x1xf32>
    %32 = arith.divf %30, %31 : vector<8x1xf32>
    %33 = vector.broadcast %25 : vector<8x1xf32> to vector<8x64xf32>
    %34 = arith.subf %21, %33 : vector<8x64xf32>
    %cst_15 = arith.constant 9.99999974E-6 : f32
    %35 = vector.broadcast %cst_15 : f32 to vector<8x1xf32>
    %36 = arith.addf %32, %35 : vector<8x1xf32>
    %37 = math.rsqrt %36 : vector<8x1xf32>
    %38 = vector.broadcast %37 : vector<8x1xf32> to vector<8x64xf32>
    %39 = arith.mulf %34, %38 : vector<8x64xf32>
    %40 = vector.broadcast %9 : vector<1x64xf32> to vector<8x64xf32>
    %41 = arith.mulf %39, %40 : vector<8x64xf32>
    %42 = vector.broadcast %10 : vector<1x64xf32> to vector<8x64xf32>
    %43 = arith.addf %41, %42 : vector<8x64xf32>
    %44 = arith.truncf %43 : vector<8x64xf32> to vector<8x64xbf16>
    %c0_16 = arith.constant 0 : index
    %c0_17 = arith.constant 0 : index
    %c0_18 = arith.constant 0 : index
    %45 = vector.load %arg3[%c0_16, %c0_17, %c0_18] : memref<2x64x128xbf16, #tpu.memory_space<vmem>>, vector<1x64x128xbf16>
    %46 = vector.shape_cast %45 : vector<1x64x128xbf16> to vector<64x128xbf16>
    %cst_19 = arith.constant dense<0.000000e+00> : vector<8x128xf32>
    %47 = tpu.matmul %44, %46, %cst_19 {dimension_numbers = #tpu.dot_dimension_numbers<[1], [0], [0], [1], [0, 0, 1, 1], [], []>} : vector<8x64xbf16>, vector<64x128xbf16>, vector<8x128xf32> -> vector<8x128xf32>
    %48 = vector.broadcast %11 : vector<1x128xf32> to vector<8x128xf32>
    %49 = arith.addf %47, %48 : vector<8x128xf32>
    %cst_20 = arith.constant 0.000000e+00 : f32
    %50 = vector.broadcast %cst_20 : f32 to vector<8x128xf32>
    %51 = arith.maximumf %49, %50 : vector<8x128xf32>
    %52 = arith.truncf %51 : vector<8x128xf32> to vector<8x128xbf16>
    %c0_21 = arith.constant 0 : index
    %c0_22 = arith.constant 0 : index
    %c0_23 = arith.constant 0 : index
    %53 = vector.load %arg4[%c0_21, %c0_22, %c0_23] : memref<2x128x64xbf16, #tpu.memory_space<vmem>>, vector<1x128x64xbf16>
    %54 = vector.shape_cast %53 : vector<1x128x64xbf16> to vector<128x64xbf16>
    %cst_24 = arith.constant dense<0.000000e+00> : vector<8x64xf32>
    %55 = tpu.matmul %52, %54, %cst_24 {dimension_numbers = #tpu.dot_dimension_numbers<[1], [0], [0], [1], [0, 0, 1, 1], [], []>} : vector<8x128xbf16>, vector<128x64xbf16>, vector<8x64xf32> -> vector<8x64xf32>
    %56 = vector.broadcast %12 : vector<1x64xf32> to vector<8x64xf32>
    %57 = arith.addf %55, %56 : vector<8x64xf32>
    %58 = arith.addf %43, %57 : vector<8x64xf32>
    %cst_25 = arith.constant dense<0.000000e+00> : vector<8xf32>
    %59 = vector.multi_reduction <add>, %58, %cst_25 [1] : vector<8x64xf32> to vector<8xf32>
    %60 = vector.shape_cast %59 : vector<8xf32> to vector<8x1xf32>
    %cst_26 = arith.constant 6.400000e+01 : f32
    %61 = vector.broadcast %cst_26 : f32 to vector<8x1xf32>
    %62 = arith.divf %60, %61 : vector<8x1xf32>
    %63 = vector.broadcast %62 : vector<8x1xf32> to vector<8x64xf32>
    %64 = arith.subf %58, %63 : vector<8x64xf32>
    %65 = arith.mulf %64, %64 : vector<8x64xf32>
    %cst_27 = arith.constant dense<0.000000e+00> : vector<8xf32>
    %66 = vector.multi_reduction <add>, %65, %cst_27 [1] : vector<8x64xf32> to vector<8xf32>
    %67 = vector.shape_cast %66 : vector<8xf32> to vector<8x1xf32>
    %cst_28 = arith.constant 6.400000e+01 : f32
    %68 = vector.broadcast %cst_28 : f32 to vector<8x1xf32>
    %69 = arith.divf %67, %68 : vector<8x1xf32>
    %70 = vector.broadcast %62 : vector<8x1xf32> to vector<8x64xf32>
    %71 = arith.subf %58, %70 : vector<8x64xf32>
    %cst_29 = arith.constant 9.99999974E-6 : f32
    %72 = vector.broadcast %cst_29 : f32 to vector<8x1xf32>
    %73 = arith.addf %69, %72 : vector<8x1xf32>
    %74 = math.rsqrt %73 : vector<8x1xf32>
    %75 = vector.broadcast %74 : vector<8x1xf32> to vector<8x64xf32>
    %76 = arith.mulf %71, %75 : vector<8x64xf32>
    %77 = vector.broadcast %13 : vector<1x64xf32> to vector<8x64xf32>
    %78 = arith.mulf %76, %77 : vector<8x64xf32>
    %79 = vector.broadcast %14 : vector<1x64xf32> to vector<8x64xf32>
    %80 = arith.addf %78, %79 : vector<8x64xf32>
    %c1_30 = arith.constant 1 : index
    %c0_31 = arith.constant 0 : index
    %c0_32 = arith.constant 0 : index
    %81 = vector.load %arg5[%c1_30, %c0_31, %c0_32] : memref<2x8x128xf32, #tpu.memory_space<vmem>>, vector<1x8x128xf32>
    %82 = vector.shape_cast %81 : vector<1x8x128xf32> to vector<8x128xf32>
    %83 = vector.extract_strided_slice %82 {offsets = [0, 0], sizes = [1, 64], strides = [1, 1]} : vector<8x128xf32> to vector<1x64xf32>
    %84 = vector.extract_strided_slice %82 {offsets = [1, 0], sizes = [1, 64], strides = [1, 1]} : vector<8x128xf32> to vector<1x64xf32>
    %85 = vector.extract_strided_slice %82 {offsets = [2, 0], sizes = [1, 64], strides = [1, 1]} : vector<8x128xf32> to vector<1x64xf32>
    %86 = vector.extract_strided_slice %82 {offsets = [3, 0], sizes = [1, 128], strides = [1, 1]} : vector<8x128xf32> to vector<1x128xf32>
    %87 = vector.extract_strided_slice %82 {offsets = [4, 0], sizes = [1, 64], strides = [1, 1]} : vector<8x128xf32> to vector<1x64xf32>
    %88 = vector.extract_strided_slice %82 {offsets = [5, 0], sizes = [1, 64], strides = [1, 1]} : vector<8x128xf32> to vector<1x64xf32>
    %89 = vector.extract_strided_slice %82 {offsets = [6, 0], sizes = [1, 64], strides = [1, 1]} : vector<8x128xf32> to vector<1x64xf32>
    %90 = arith.truncf %80 : vector<8x64xf32> to vector<8x64xbf16>
    %c1_33 = arith.constant 1 : index
    %c0_34 = arith.constant 0 : index
    %c0_35 = arith.constant 0 : index
    %91 = vector.load %arg2[%c1_33, %c0_34, %c0_35] : memref<2x64x64xbf16, #tpu.memory_space<vmem>>, vector<1x64x64xbf16>
    %92 = vector.shape_cast %91 : vector<1x64x64xbf16> to vector<64x64xbf16>
    %cst_36 = arith.constant dense<0.000000e+00> : vector<8x64xf32>
    %93 = tpu.matmul %90, %92, %cst_36 {dimension_numbers = #tpu.dot_dimension_numbers<[1], [0], [0], [1], [0, 0, 1, 1], [], []>} : vector<8x64xbf16>, vector<64x64xbf16>, vector<8x64xf32> -> vector<8x64xf32>
    %94 = vector.broadcast %83 : vector<1x64xf32> to vector<8x64xf32>
    %95 = arith.addf %93, %94 : vector<8x64xf32>
    %96 = arith.addf %80, %95 : vector<8x64xf32>
    %cst_37 = arith.constant dense<0.000000e+00> : vector<8xf32>
    %97 = vector.multi_reduction <add>, %96, %cst_37 [1] : vector<8x64xf32> to vector<8xf32>
    %98 = vector.shape_cast %97 : vector<8xf32> to vector<8x1xf32>
    %cst_38 = arith.constant 6.400000e+01 : f32
    %99 = vector.broadcast %cst_38 : f32 to vector<8x1xf32>
    %100 = arith.divf %98, %99 : vector<8x1xf32>
    %101 = vector.broadcast %100 : vector<8x1xf32> to vector<8x64xf32>
    %102 = arith.subf %96, %101 : vector<8x64xf32>
    %103 = arith.mulf %102, %102 : vector<8x64xf32>
    %cst_39 = arith.constant dense<0.000000e+00> : vector<8xf32>
    %104 = vector.multi_reduction <add>, %103, %cst_39 [1] : vector<8x64xf32> to vector<8xf32>
    %105 = vector.shape_cast %104 : vector<8xf32> to vector<8x1xf32>
    %cst_40 = arith.constant 6.400000e+01 : f32
    %106 = vector.broadcast %cst_40 : f32 to vector<8x1xf32>
    %107 = arith.divf %105, %106 : vector<8x1xf32>
    %108 = vector.broadcast %100 : vector<8x1xf32> to vector<8x64xf32>
    %109 = arith.subf %96, %108 : vector<8x64xf32>
    %cst_41 = arith.constant 9.99999974E-6 : f32
    %110 = vector.broadcast %cst_41 : f32 to vector<8x1xf32>
    %111 = arith.addf %107, %110 : vector<8x1xf32>
    %112 = math.rsqrt %111 : vector<8x1xf32>
    %113 = vector.broadcast %112 : vector<8x1xf32> to vector<8x64xf32>
    %114 = arith.mulf %109, %113 : vector<8x64xf32>
    %115 = vector.broadcast %84 : vector<1x64xf32> to vector<8x64xf32>
    %116 = arith.mulf %114, %115 : vector<8x64xf32>
    %117 = vector.broadcast %85 : vector<1x64xf32> to vector<8x64xf32>
    %118 = arith.addf %116, %117 : vector<8x64xf32>
    %119 = arith.truncf %118 : vector<8x64xf32> to vector<8x64xbf16>
    %c1_42 = arith.constant 1 : index
    %c0_43 = arith.constant 0 : index
    %c0_44 = arith.constant 0 : index
    %120 = vector.load %arg3[%c1_42, %c0_43, %c0_44] : memref<2x64x128xbf16, #tpu.memory_space<vmem>>, vector<1x64x128xbf16>
    %121 = vector.shape_cast %120 : vector<1x64x128xbf16> to vector<64x128xbf16>
    %cst_45 = arith.constant dense<0.000000e+00> : vector<8x128xf32>
    %122 = tpu.matmul %119, %121, %cst_45 {dimension_numbers = #tpu.dot_dimension_numbers<[1], [0], [0], [1], [0, 0, 1, 1], [], []>} : vector<8x64xbf16>, vector<64x128xbf16>, vector<8x128xf32> -> vector<8x128xf32>
    %123 = vector.broadcast %86 : vector<1x128xf32> to vector<8x128xf32>
    %124 = arith.addf %122, %123 : vector<8x128xf32>
    %cst_46 = arith.constant 0.000000e+00 : f32
    %125 = vector.broadcast %cst_46 : f32 to vector<8x128xf32>
    %126 = arith.maximumf %124, %125 : vector<8x128xf32>
    %127 = arith.truncf %126 : vector<8x128xf32> to vector<8x128xbf16>
    %c1_47 = arith.constant 1 : index
    %c0_48 = arith.constant 0 : index
    %c0_49 = arith.constant 0 : index
    %128 = vector.load %arg4[%c1_47, %c0_48, %c0_49] : memref<2x128x64xbf16, #tpu.memory_space<vmem>>, vector<1x128x64xbf16>
    %129 = vector.shape_cast %128 : vector<1x128x64xbf16> to vector<128x64xbf16>
    %cst_50 = arith.constant dense<0.000000e+00> : vector<8x64xf32>
    %130 = tpu.matmul %127, %129, %cst_50 {dimension_numbers = #tpu.dot_dimension_numbers<[1], [0], [0], [1], [0, 0, 1, 1], [], []>} : vector<8x128xbf16>, vector<128x64xbf16>, vector<8x64xf32> -> vector<8x64xf32>
    %131 = vector.broadcast %87 : vector<1x64xf32> to vector<8x64xf32>
    %132 = arith.addf %130, %131 : vector<8x64xf32>
    %133 = arith.addf %118, %132 : vector<8x64xf32>
    %cst_51 = arith.constant dense<0.000000e+00> : vector<8xf32>
    %134 = vector.multi_reduction <add>, %133, %cst_51 [1] : vector<8x64xf32> to vector<8xf32>
    %135 = vector.shape_cast %134 : vector<8xf32> to vector<8x1xf32>
    %cst_52 = arith.constant 6.400000e+01 : f32
    %136 = vector.broadcast %cst_52 : f32 to vector<8x1xf32>
    %137 = arith.divf %135, %136 : vector<8x1xf32>
    %138 = vector.broadcast %137 : vector<8x1xf32> to vector<8x64xf32>
    %139 = arith.subf %133, %138 : vector<8x64xf32>
    %140 = arith.mulf %139, %139 : vector<8x64xf32>
    %cst_53 = arith.constant dense<0.000000e+00> : vector<8xf32>
    %141 = vector.multi_reduction <add>, %140, %cst_53 [1] : vector<8x64xf32> to vector<8xf32>
    %142 = vector.shape_cast %141 : vector<8xf32> to vector<8x1xf32>
    %cst_54 = arith.constant 6.400000e+01 : f32
    %143 = vector.broadcast %cst_54 : f32 to vector<8x1xf32>
    %144 = arith.divf %142, %143 : vector<8x1xf32>
    %145 = vector.broadcast %137 : vector<8x1xf32> to vector<8x64xf32>
    %146 = arith.subf %133, %145 : vector<8x64xf32>
    %cst_55 = arith.constant 9.99999974E-6 : f32
    %147 = vector.broadcast %cst_55 : f32 to vector<8x1xf32>
    %148 = arith.addf %144, %147 : vector<8x1xf32>
    %149 = math.rsqrt %148 : vector<8x1xf32>
    %150 = vector.broadcast %149 : vector<8x1xf32> to vector<8x64xf32>
    %151 = arith.mulf %146, %150 : vector<8x64xf32>
    %152 = vector.broadcast %88 : vector<1x64xf32> to vector<8x64xf32>
    %153 = arith.mulf %151, %152 : vector<8x64xf32>
    %154 = vector.broadcast %89 : vector<1x64xf32> to vector<8x64xf32>
    %155 = arith.addf %153, %154 : vector<8x64xf32>
    %156 = arith.truncf %155 : vector<8x64xf32> to vector<8x64xbf16>
    %c0_56 = arith.constant 0 : index
    %c0_57 = arith.constant 0 : index
    %157 = vector.load %arg6[%c0_56, %c0_57] : memref<64x64xbf16, #tpu.memory_space<vmem>>, vector<64x64xbf16>
    %cst_58 = arith.constant dense<0.000000e+00> : vector<8x64xf32>
    %158 = tpu.matmul %156, %157, %cst_58 {dimension_numbers = #tpu.dot_dimension_numbers<[1], [0], [0], [1], [0, 0, 1, 1], [], []>} : vector<8x64xbf16>, vector<64x64xbf16>, vector<8x64xf32> -> vector<8x64xf32>
    %159 = vector.broadcast %1 : vector<1x64xf32> to vector<8x64xf32>
    %160 = arith.addf %158, %159 : vector<8x64xf32>
    %cst_59 = arith.constant 0.000000e+00 : f32
    %161 = vector.broadcast %cst_59 : f32 to vector<8x64xf32>
    %162 = arith.maximumf %160, %161 : vector<8x64xf32>
    %163 = arith.truncf %162 : vector<8x64xf32> to vector<8x64xbf16>
    %c0_60 = arith.constant 0 : index
    %c0_61 = arith.constant 0 : index
    %164 = vector.load %arg7[%c0_60, %c0_61] : memref<64x8xbf16, #tpu.memory_space<vmem>>, vector<64x8xbf16>
    %cst_62 = arith.constant dense<0.000000e+00> : vector<8x8xf32>
    %165 = tpu.matmul %163, %164, %cst_62 {dimension_numbers = #tpu.dot_dimension_numbers<[1], [0], [0], [1], [0, 0, 1, 1], [], []>} : vector<8x64xbf16>, vector<64x8xbf16>, vector<8x8xf32> -> vector<8x8xf32>
    %166 = vector.broadcast %2 : vector<1x8xf32> to vector<8x8xf32>
    %167 = arith.addf %165, %166 : vector<8x8xf32>
    %c0_63 = arith.constant 0 : index
    %c0_64 = arith.constant 0 : index
    %168 = vector.load %arg9[%c0_63, %c0_64] : memref<8x8xf32, #tpu.memory_space<vmem>>, vector<8x8xf32>
    tpu.vector_store %arg9[%c0_63, %c0_64], %167 {strides = array<i32>} : memref<8x8xf32, #tpu.memory_space<vmem>>, vector<8x8xf32>,
    return
  }
  func.func @transform_0(%arg0: i32) -> (i32, i32) {
    %c0_i32 = arith.constant 0 : i32
    %c0_i32_0 = arith.constant 0 : i32
    return %arg0, %c0_i32 : i32, i32
  }
  func.func @transform_1(%arg0: i32) -> (i32, i32, i32) {
    %c0_i32 = arith.constant 0 : i32
    %c0_i32_0 = arith.constant 0 : i32
    %c0_i32_1 = arith.constant 0 : i32
    %c0_i32_2 = arith.constant 0 : i32
    return %c0_i32, %c0_i32_0, %c0_i32_1 : i32, i32, i32
  }
  func.func @transform_2(%arg0: i32) -> (i32, i32, i32) {
    %c0_i32 = arith.constant 0 : i32
    %c0_i32_0 = arith.constant 0 : i32
    %c0_i32_1 = arith.constant 0 : i32
    %c0_i32_2 = arith.constant 0 : i32
    return %c0_i32, %c0_i32_0, %c0_i32_1 : i32, i32, i32
  }
  func.func @transform_3(%arg0: i32) -> (i32, i32, i32) {
    %c0_i32 = arith.constant 0 : i32
    %c0_i32_0 = arith.constant 0 : i32
    %c0_i32_1 = arith.constant 0 : i32
    %c0_i32_2 = arith.constant 0 : i32
    return %c0_i32, %c0_i32_0, %c0_i32_1 : i32, i32, i32
  }
  func.func @transform_4(%arg0: i32) -> (i32, i32, i32) {
    %c0_i32 = arith.constant 0 : i32
    %c0_i32_0 = arith.constant 0 : i32
    %c0_i32_1 = arith.constant 0 : i32
    %c0_i32_2 = arith.constant 0 : i32
    return %c0_i32, %c0_i32_0, %c0_i32_1 : i32, i32, i32
  }
  func.func @transform_5(%arg0: i32) -> (i32, i32) {
    %c0_i32 = arith.constant 0 : i32
    %c0_i32_0 = arith.constant 0 : i32
    %c0_i32_1 = arith.constant 0 : i32
    return %c0_i32, %c0_i32_0 : i32, i32
  }
  func.func @transform_6(%arg0: i32) -> (i32, i32) {
    %c0_i32 = arith.constant 0 : i32
    %c0_i32_0 = arith.constant 0 : i32
    %c0_i32_1 = arith.constant 0 : i32
    return %c0_i32, %c0_i32_0 : i32, i32
  }
  func.func @transform_7(%arg0: i32) -> (i32, i32) {
    %c0_i32 = arith.constant 0 : i32
    %c0_i32_0 = arith.constant 0 : i32
    %c0_i32_1 = arith.constant 0 : i32
    return %c0_i32, %c0_i32_0 : i32, i32
  }
  func.func @transform_8(%arg0: i32) -> (i32, i32) {
    %c0_i32 = arith.constant 0 : i32
    %c0_i32_0 = arith.constant 0 : i32
    return %arg0, %c0_i32 : i32, i32
  }
}

</mosaic_0001>

<llo_original>
// kernel: tpu_custom_call.1
$region0: #{tpu_custom_call.1}
  #allocation0 [shape = 'u32[]', space=smem, size = 0x4, offset = 0x4, fixed_abs, tag = 'smem constant byte address 0x4 - core index']
  #allocation1 [shape = 'u32[144,128]{1,0:T(1,128)}', space=vmem, size = 0x12000, scoped, tag = 'internal scratch']
  %s0 = inlined_call_operand.vmem [shape: f32[8,64], index: 0, kind: input, shape index: {}]
  %s1 = inlined_call_operand.vmem [shape: bf16[2,64,64], index: 1, kind: input, shape index: {}]
  %s2 = inlined_call_operand.vmem [shape: bf16[2,64,128], index: 2, kind: input, shape index: {}]
  %s3 = inlined_call_operand.vmem [shape: bf16[2,128,64], index: 3, kind: input, shape index: {}]
  %s4 = inlined_call_operand.vmem [shape: f32[2,8,128], index: 4, kind: input, shape index: {}]
  %s5 = inlined_call_operand.vmem [shape: bf16[64,64], index: 5, kind: input, shape index: {}]
  %s6 = inlined_call_operand.vmem [shape: bf16[64,8], index: 6, kind: input, shape index: {}]
  %s7 = inlined_call_operand.vmem [shape: f32[8,64], index: 7, kind: input, shape index: {}]
  %s8 = inlined_call_operand.hbm [shape: f32[8,8], index: 8, kind: output, shape index: {}]
  %s9 = sld [smem:[#allocation0]]
  $region42: #{tpu_custom_call.1} parent=0
    _
  %s11 = ssub.s32 1, %s9
  %s12 = scalar_select 0, %s11, %s9
  $region1: #{tpu_custom_call.1} parent=0
    #allocation2 [shape = 'u8[4096]{0}', space=vmem, size = 0x1000, scoped, tag = 'output window, operand 0, single buffered']
    #allocation3 [shape = 's32[1]{0}', space=sflag, size = 0x4, scoped, tag = 'scoped memory for tpu_custom_call.1']
    %13 = vsyncpa [#allocation3], 0
    // Predicated region
    $region2: #{tpu_custom_call.1} parent=1 // pred_check
      _
    $region3: #{tpu_custom_call.1} parent=1 // pred_check_branch
      %15 = sbr.rel (0) target = $region5
    $region4: #{tpu_custom_call.1} parent=1 // pred_region
      _
    $region5: #{tpu_custom_call.1} parent=1 // pred_fallthru
      _
    // Predicated region
    $region6: #{tpu_custom_call.1} parent=1 // pred_check
      _
    $region7: #{tpu_custom_call.1} parent=1 // pred_check_branch
      %17 = sbr.rel (0) target = $region9
    $region8: #{tpu_custom_call.1} parent=1 // pred_region
      _
    $region9: #{tpu_custom_call.1} parent=1 // pred_fallthru
      _
    // Predicated region
    $region10: #{tpu_custom_call.1} parent=1 // pred_check
      _
    $region11: #{tpu_custom_call.1} parent=1 // pred_check_branch
      %19 = sbr.rel (0) target = $region13
    $region12: #{tpu_custom_call.1} parent=1 // pred_region
      _
    $region13: #{tpu_custom_call.1} parent=1 // pred_fallthru
      _
    // Predicated region
    $region14: #{tpu_custom_call.1} parent=1 // pred_check
      _
    $region15: #{tpu_custom_call.1} parent=1 // pred_check_branch
      %21 = sbr.rel (0) target = $region17
    $region16: #{tpu_custom_call.1} parent=1 // pred_region
      _
    $region17: #{tpu_custom_call.1} parent=1 // pred_fallthru
      _
    // Predicated region
    $region18: #{tpu_custom_call.1} parent=1 // pred_check
      _
    $region19: #{tpu_custom_call.1} parent=1 // pred_check_branch
      %23 = sbr.rel (0) target = $region21
    $region20: #{tpu_custom_call.1} parent=1 // pred_region
      _
    $region21: #{tpu_custom_call.1} parent=1 // pred_fallthru
      _
    // Predicated region
    $region22: #{tpu_custom_call.1} parent=1 // pred_check
      _
    $region23: #{tpu_custom_call.1} parent=1 // pred_check_branch
      %25 = sbr.rel (0) target = $region25
    $region24: #{tpu_custom_call.1} parent=1 // pred_region
      _
    $region25: #{tpu_custom_call.1} parent=1 // pred_fallthru
      _
    // Predicated region
    $region26: #{tpu_custom_call.1} parent=1 // pred_check
      _
    $region27: #{tpu_custom_call.1} parent=1 // pred_check_branch
      %27 = sbr.rel (0) target = $region29
    $region28: #{tpu_custom_call.1} parent=1 // pred_region
      _
    $region29: #{tpu_custom_call.1} parent=1 // pred_fallthru
      _
    // Predicated region
    $region30: #{tpu_custom_call.1} parent=1 // pred_check
      _
    $region31: #{tpu_custom_call.1} parent=1 // pred_check_branch
      %29 = sbr.rel (0) target = $region33
    $region32: #{tpu_custom_call.1} parent=1 // pred_region
      _
    $region33: #{tpu_custom_call.1} parent=1 // pred_fallthru
      _
    %v31 = vld [vmem:[%s7] sm:$0x1]
    %v32 = vld [vmem:[%s7 + $0x1] sm:$0x1]
    %v33 = vld [vmem:[%s7 + $0x2] sm:$0x1]
    %v34 = vld [vmem:[%s0] sm:$0xff]
    %v35 = vlaneseq
    %v36 = vshrl.u32 %v35, 7
    %v37 = vsub.s32 0, %v36
    %v38 = vrot.slane %v31, %v37
    %v39 = vadd.f32 %v34, %v38
    %v40 = vld [vmem:[%s4] sm:$0xff]
    %v41 = vpack.c.bf16 %v39, %v39
    %v42 = vld [vmem:[%s1] sm:$0xf]
    %v43 = vld [vmem:[%s1 + $0x4] sm:$0xf]
    %v44 = vld [vmem:[%s1 + $0x8] sm:$0xf]
    %v45 = vld [vmem:[%s1 + $0xc] sm:$0xf]
    %v46 = vld [vmem:[%s1 + $0x10] sm:$0xf]
    %v47 = vld [vmem:[%s1 + $0x14] sm:$0xf]
    %v48 = vld [vmem:[%s1 + $0x18] sm:$0xf]
    %v49 = vld [vmem:[%s1 + $0x1c] sm:$0xf]
    %v50 = vlaneseq
    %v51 = vshrl.u32 %v50, 7
    %v52 = vsub.s32 0, %v51
    %v53 = vrot.slane %v40, %v52
    %v62 = vunpack.c.l.b16 %v42
    %v63 = vunpack.c.l.b16 %v43
    %v64 = vunpack.c.l.b16 %v44
    %v65 = vunpack.c.l.b16 %v45
    %v66 = vunpack.c.l.b16 %v46
    %v67 = vunpack.c.l.b16 %v47
    %v68 = vunpack.c.l.b16 %v48
    %v69 = vunpack.c.l.b16 %v49
    %v70 = vpack.c.b16 %v63, %v62
    %v71 = vpack.c.b16 %v65, %v64
    %v72 = vpack.c.b16 %v67, %v66
    %v73 = vpack.c.b16 %v69, %v68
    %vm78 = vcmask 523264
    %v80 = vsel %vm78, %v41, 0
    %82 = vmatprep.subr.bf16.mxu0 0
    %83 = vmatpush1.bf16.msra.mxu0 %v70
    %84 = vmatprep.subr.bf16.mxu0 0
    %85 = vmatpush1.bf16.msra.mxu0 %v71
    %86 = vmatprep.subr.bf16.mxu0 0
    %87 = vmatpush1.bf16.msra.mxu0 %v72
    %88 = vmatprep.subr.bf16.mxu0 0
    %89 = vmatpush1.bf16.msra.mxu0 %v73
    %90 = vmatprep.subr.bf16.mxu0 0
    %91 = vmatpush1.bf16.msra.mxu0 0
    %92 = vmatprep.subr.bf16.mxu0 0
    %93 = vmatpush1.bf16.msra.mxu0 0
    %94 = vmatprep.subr.bf16.mxu0 0
    %95 = vmatpush1.bf16.msra.mxu0 0
    %96 = vmatprep.subr.bf16.mxu0 0
    %97 = vmatpush1.bf16.msra.mxu0 0
    %98 = vmatprep.subr.bf16.mxu0 0
    %99 = vmatpush1.bf16.msra.mxu0 0
    %100 = vmatprep.subr.bf16.mxu0 0
    %101 = vmatpush1.bf16.msra.mxu0 0
    %102 = vmatprep.subr.bf16.mxu0 0
    %103 = vmatpush1.bf16.msra.mxu0 0
    %104 = vmatprep.subr.bf16.mxu0 0
    %105 = vmatpush1.bf16.msra.mxu0 0
    %106 = vmatprep.subr.bf16.mxu0 0
    %107 = vmatpush1.bf16.msra.mxu0 0
    %108 = vmatprep.subr.bf16.mxu0 0
    %109 = vmatpush1.bf16.msra.mxu0 0
    %110 = vmatprep.subr.bf16.mxu0 0
    %111 = vmatpush1.bf16.msra.mxu0 0
    %112 = vmatprep.subr.bf16.mxu0 0
    %113 = vmatpush1.bf16.msra.mxu0 0
    %114 = vmatprep.mubr.bf16.mxu0 0
    %115 = vmatmul.mubr.bf16.gmra.mrb[0].mxu0 %v80
    %v116 = vpop.f32.mrb[0].mxu0
    %v117 = vadd.f32 %v53, %v116
    %v118 = vpop.f32.mrb[0].mxu0
    %v119 = vpop.f32.mrb[0].mxu0
    %v120 = vpop.f32.mrb[0].mxu0
    %121 = vdwg.mxu0
    %v122 = vadd.f32 %v39, %v117
    %v123 = vsel %vm78, %v122, 0.0
    %124 = vadd.xlane.f32.xlu0 %v123
    %v125 = vpop.xlane.xlu0 %124
    %v126 = vrcp.pop 64.0
    %v127 = vmul.f32 %v125, %v126
    %v128 = vsub.f32 %v122, %v127
    %v129 = vmul.f32 %v128, %v128
    %v130 = vsel %vm78, %v129, 0.0
    %131 = vadd.xlane.f32.xlu0 %v130
    %v132 = vpop.xlane.xlu0 %131
    %v133 = vmul.f32 %v132, %v126
    %v134 = vadd.f32 %v133, 1e-05
    %v135 = vrsqrt.pop %v134
    %v136 = vmul.f32 %v128, %v135
    %v137 = vlaneseq
    %v138 = vshrl.u32 %v137, 7
    %v139 = vsub.s32 1, %v138
    %v140 = vrot.slane %v40, %v139
    %v141 = vmul.f32 %v136, %v140
    %v142 = vlaneseq
    %v143 = vshrl.u32 %v142, 7
    %v144 = vsub.s32 2, %v143
    %v145 = vrot.slane %v40, %v144
    %v146 = vadd.f32 %v141, %v145
    %v147 = vpack.c.bf16 %v146, %v146
    %v148 = vld [vmem:[%s2] sm:$0xf]
    %v149 = vld [vmem:[%s2 + $0x4] sm:$0xf]
    %v150 = vld [vmem:[%s2 + $0x8] sm:$0xf]
    %v151 = vld [vmem:[%s2 + $0xc] sm:$0xf]
    %v152 = vld [vmem:[%s2 + $0x10] sm:$0xf]
    %v153 = vld [vmem:[%s2 + $0x14] sm:$0xf]
    %v154 = vld [vmem:[%s2 + $0x18] sm:$0xf]
    %v155 = vld [vmem:[%s2 + $0x1c] sm:$0xf]
    %v156 = vlaneseq
    %v157 = vshrl.u32 %v156, 7
    %v158 = vsub.s32 3, %v157
    %v159 = vrot.slane %v40, %v158
    %v168 = vunpack.c.l.b16 %v148
    %v169 = vunpack.c.l.b16 %v149
    %v170 = vunpack.c.l.b16 %v150
    %v171 = vunpack.c.l.b16 %v151
    %v172 = vunpack.c.l.b16 %v152
    %v173 = vunpack.c.l.b16 %v153
    %v174 = vunpack.c.l.b16 %v154
    %v175 = vunpack.c.l.b16 %v155
    %v176 = vpack.c.b16 %v169, %v168
    %v177 = vpack.c.b16 %v171, %v170
    %v178 = vpack.c.b16 %v173, %v172
    %v179 = vpack.c.b16 %v175, %v174
    %v185 = vsel %vm78, %v147, 0
    %187 = vmatprep.subr.bf16.mxu0 0
    %188 = vmatpush1.bf16.msra.mxu0 %v176
    %189 = vmatprep.subr.bf16.mxu0 0
    %190 = vmatpush1.bf16.msra.mxu0 %v177
    %191 = vmatprep.subr.bf16.mxu0 0
    %192 = vmatpush1.bf16.msra.mxu0 %v178
    %193 = vmatprep.subr.bf16.mxu0 0
    %194 = vmatpush1.bf16.msra.mxu0 %v179
    %195 = vmatprep.subr.bf16.mxu0 0
    %196 = vmatpush1.bf16.msra.mxu0 0
    %197 = vmatprep.subr.bf16.mxu0 0
    %198 = vmatpush1.bf16.msra.mxu0 0
    %199 = vmatprep.subr.bf16.mxu0 0
    %200 = vmatpush1.bf16.msra.mxu0 0
    %201 = vmatprep.subr.bf16.mxu0 0
    %202 = vmatpush1.bf16.msra.mxu0 0
    %203 = vmatprep.subr.bf16.mxu0 0
    %204 = vmatpush1.bf16.msra.mxu0 0
    %205 = vmatprep.subr.bf16.mxu0 0
    %206 = vmatpush1.bf16.msra.mxu0 0
    %207 = vmatprep.subr.bf16.mxu0 0
    %208 = vmatpush1.bf16.msra.mxu0 0
    %209 = vmatprep.subr.bf16.mxu0 0
    %210 = vmatpush1.bf16.msra.mxu0 0
    %211 = vmatprep.subr.bf16.mxu0 0
    %212 = vmatpush1.bf16.msra.mxu0 0
    %213 = vmatprep.subr.bf16.mxu0 0
    %214 = vmatpush1.bf16.msra.mxu0 0
    %215 = vmatprep.subr.bf16.mxu0 0
    %216 = vmatpush1.bf16.msra.mxu0 0
    %217 = vmatprep.subr.bf16.mxu0 0
    %218 = vmatpush1.bf16.msra.mxu0 0
    %219 = vmatprep.mubr.bf16.mxu0 0
    %220 = vmatmul.mubr.bf16.gmra.mrb[0].mxu0 %v185
    %v221 = vpop.f32.mrb[0].mxu0
    %v222 = vadd.f32 %v159, %v221
    %v223 = vpop.f32.mrb[0].mxu0
    %v224 = vpop.f32.mrb[0].mxu0
    %v225 = vpop.f32.mrb[0].mxu0
    %226 = vdwg.mxu0
    %v227 = vmax.f32 %v222, 0.0
    %v228 = vpack.c.bf16 %v227, %v227
    %v229 = vld [vmem:[%s3] sm:$0xf]
    %v230 = vld [vmem:[%s3 + $0x4] sm:$0xf]
    %v231 = vld [vmem:[%s3 + $0x8] sm:$0xf]
    %v232 = vld [vmem:[%s3 + $0xc] sm:$0xf]
    %v233 = vld [vmem:[%s3 + $0x10] sm:$0xf]
    %v234 = vld [vmem:[%s3 + $0x14] sm:$0xf]
    %v235 = vld [vmem:[%s3 + $0x18] sm:$0xf]
    %v236 = vld [vmem:[%s3 + $0x1c] sm:$0xf]
    %v237 = vld [vmem:[%s3 + $0x20] sm:$0xf]
    %v238 = vld [vmem:[%s3 + $0x24] sm:$0xf]
    %v239 = vld [vmem:[%s3 + $0x28] sm:$0xf]
    %v240 = vld [vmem:[%s3 + $0x2c] sm:$0xf]
    %v241 = vld [vmem:[%s3 + $0x30] sm:$0xf]
    %v242 = vld [vmem:[%s3 + $0x34] sm:$0xf]
    %v243 = vld [vmem:[%s3 + $0x38] sm:$0xf]
    %v244 = vld [vmem:[%s3 + $0x3c] sm:$0xf]
    %v245 = vlaneseq
    %v246 = vshrl.u32 %v245, 7
    %v247 = vsub.s32 4, %v246
    %v248 = vrot.slane %v40, %v247
    %v265 = vunpack.c.l.b16 %v229
    %v266 = vunpack.c.l.b16 %v230
    %v267 = vunpack.c.l.b16 %v231
    %v268 = vunpack.c.l.b16 %v232
    %v269 = vunpack.c.l.b16 %v233
    %v270 = vunpack.c.l.b16 %v234
    %v271 = vunpack.c.l.b16 %v235
    %v272 = vunpack.c.l.b16 %v236
    %v273 = vunpack.c.l.b16 %v237
    %v274 = vunpack.c.l.b16 %v238
    %v275 = vunpack.c.l.b16 %v239
    %v276 = vunpack.c.l.b16 %v240
    %v277 = vunpack.c.l.b16 %v241
    %v278 = vunpack.c.l.b16 %v242
    %v279 = vunpack.c.l.b16 %v243
    %v280 = vunpack.c.l.b16 %v244
    %v281 = vpack.c.b16 %v266, %v265
    %v282 = vpack.c.b16 %v268, %v267
    %v283 = vpack.c.b16 %v270, %v269
    %v284 = vpack.c.b16 %v272, %v271
    %v285 = vpack.c.b16 %v274, %v273
    %v286 = vpack.c.b16 %v276, %v275
    %v287 = vpack.c.b16 %v278, %v277
    %v288 = vpack.c.b16 %v280, %v279
    %297 = vmatprep.subr.bf16.mxu0 0
    %298 = vmatpush1.bf16.msra.mxu0 %v281
    %299 = vmatprep.subr.bf16.mxu0 0
    %300 = vmatpush1.bf16.msra.mxu0 %v282
    %301 = vmatprep.subr.bf16.mxu0 0
    %302 = vmatpush1.bf16.msra.mxu0 %v283
    %303 = vmatprep.subr.bf16.mxu0 0
    %304 = vmatpush1.bf16.msra.mxu0 %v284
    %305 = vmatprep.subr.bf16.mxu0 0
    %306 = vmatpush1.bf16.msra.mxu0 %v285
    %307 = vmatprep.subr.bf16.mxu0 0
    %308 = vmatpush1.bf16.msra.mxu0 %v286
    %309 = vmatprep.subr.bf16.mxu0 0
    %310 = vmatpush1.bf16.msra.mxu0 %v287
    %311 = vmatprep.subr.bf16.mxu0 0
    %312 = vmatpush1.bf16.msra.mxu0 %v288
    %313 = vmatprep.subr.bf16.mxu0 0
    %314 = vmatpush1.bf16.msra.mxu0 0
    %315 = vmatprep.subr.bf16.mxu0 0
    %316 = vmatpush1.bf16.msra.mxu0 0
    %317 = vmatprep.subr.bf16.mxu0 0
    %318 = vmatpush1.bf16.msra.mxu0 0
    %319 = vmatprep.subr.bf16.mxu0 0
    %320 = vmatpush1.bf16.msra.mxu0 0
    %321 = vmatprep.subr.bf16.mxu0 0
    %322 = vmatpush1.bf16.msra.mxu0 0
    %323 = vmatprep.subr.bf16.mxu0 0
    %324 = vmatpush1.bf16.msra.mxu0 0
    %325 = vmatprep.subr.bf16.mxu0 0
    %326 = vmatpush1.bf16.msra.mxu0 0
    %327 = vmatprep.subr.bf16.mxu0 0
    %328 = vmatpush1.bf16.msra.mxu0 0
    %329 = vmatprep.mubr.bf16.mxu0 0
    %330 = vmatmul.mubr.bf16.gmra.mrb[0].mxu0 %v228
    %v331 = vpop.f32.mrb[0].mxu0
    %v332 = vadd.f32 %v248, %v331
    %v333 = vpop.f32.mrb[0].mxu0
    %v334 = vpop.f32.mrb[0].mxu0
    %v335 = vpop.f32.mrb[0].mxu0
    %336 = vdwg.mxu0
    %v337 = vadd.f32 %v146, %v332
    %v338 = vsel %vm78, %v337, 0.0
    %339 = vadd.xlane.f32.xlu0 %v338
    %v340 = vpop.xlane.xlu0 %339
    %v341 = vmul.f32 %v340, %v126
    %v342 = vsub.f32 %v337, %v341
    %v343 = vmul.f32 %v342, %v342
    %v344 = vsel %vm78, %v343, 0.0
    %345 = vadd.xlane.f32.xlu0 %v344
    %v346 = vpop.xlane.xlu0 %345
    %v347 = vmul.f32 %v346, %v126
    %v348 = vadd.f32 %v347, 1e-05
    %v349 = vrsqrt.pop %v348
    %v350 = vmul.f32 %v342, %v349
    %v351 = vlaneseq
    %v352 = vshrl.u32 %v351, 7
    %v353 = vsub.s32 5, %v352
    %v354 = vrot.slane %v40, %v353
    %v355 = vmul.f32 %v350, %v354
    %v356 = vlaneseq
    %v357 = vshrl.u32 %v356, 7
    %v358 = vsub.s32 6, %v357
    %v359 = vrot.slane %v40, %v358
    %v360 = vadd.f32 %v355, %v359
    %s361 = scalar_lea.vmem %s4, 8
    %v362 = vld [vmem:[%s361] sm:$0xff]
    %v363 = vpack.c.bf16 %v360, %v360
    %s364 = scalar_lea.vmem %s1, 32
    %v365 = vld [vmem:[%s364] sm:$0xf]
    %v366 = vld [vmem:[%s364 + $0x4] sm:$0xf]
    %v367 = vld [vmem:[%s364 + $0x8] sm:$0xf]
    %v368 = vld [vmem:[%s364 + $0xc] sm:$0xf]
    %v369 = vld [vmem:[%s364 + $0x10] sm:$0xf]
    %v370 = vld [vmem:[%s364 + $0x14] sm:$0xf]
    %v371 = vld [vmem:[%s364 + $0x18] sm:$0xf]
    %v372 = vld [vmem:[%s364 + $0x1c] sm:$0xf]
    %v373 = vlaneseq
    %v374 = vshrl.u32 %v373, 7
    %v375 = vsub.s32 0, %v374
    %v376 = vrot.slane %v362, %v375
    %v385 = vunpack.c.l.b16 %v365
    %v386 = vunpack.c.l.b16 %v366
    %v387 = vunpack.c.l.b16 %v367
    %v388 = vunpack.c.l.b16 %v368
    %v389 = vunpack.c.l.b16 %v369
    %v390 = vunpack.c.l.b16 %v370
    %v391 = vunpack.c.l.b16 %v371
    %v392 = vunpack.c.l.b16 %v372
    %v393 = vpack.c.b16 %v386, %v385
    %v394 = vpack.c.b16 %v388, %v387
    %v395 = vpack.c.b16 %v390, %v389
    %v396 = vpack.c.b16 %v392, %v391
    %v402 = vsel %vm78, %v363, 0
    %404 = vmatprep.subr.bf16.mxu0 0
    %405 = vmatpush1.bf16.msra.mxu0 %v393
    %406 = vmatprep.subr.bf16.mxu0 0
    %407 = vmatpush1.bf16.msra.mxu0 %v394
    %408 = vmatprep.subr.bf16.mxu0 0
    %409 = vmatpush1.bf16.msra.mxu0 %v395
    %410 = vmatprep.subr.bf16.mxu0 0
    %411 = vmatpush1.bf16.msra.mxu0 %v396
    %412 = vmatprep.subr.bf16.mxu0 0
    %413 = vmatpush1.bf16.msra.mxu0 0
    %414 = vmatprep.subr.bf16.mxu0 0
    %415 = vmatpush1.bf16.msra.mxu0 0
    %416 = vmatprep.subr.bf16.mxu0 0
    %417 = vmatpush1.bf16.msra.mxu0 0
    %418 = vmatprep.subr.bf16.mxu0 0
    %419 = vmatpush1.bf16.msra.mxu0 0
    %420 = vmatprep.subr.bf16.mxu0 0
    %421 = vmatpush1.bf16.msra.mxu0 0
    %422 = vmatprep.subr.bf16.mxu0 0
    %423 = vmatpush1.bf16.msra.mxu0 0
    %424 = vmatprep.subr.bf16.mxu0 0
    %425 = vmatpush1.bf16.msra.mxu0 0
    %426 = vmatprep.subr.bf16.mxu0 0
    %427 = vmatpush1.bf16.msra.mxu0 0
    %428 = vmatprep.subr.bf16.mxu0 0
    %429 = vmatpush1.bf16.msra.mxu0 0
    %430 = vmatprep.subr.bf16.mxu0 0
    %431 = vmatpush1.bf16.msra.mxu0 0
    %432 = vmatprep.subr.bf16.mxu0 0
    %433 = vmatpush1.bf16.msra.mxu0 0
    %434 = vmatprep.subr.bf16.mxu0 0
    %435 = vmatpush1.bf16.msra.mxu0 0
    %436 = vmatprep.mubr.bf16.mxu0 0
    %437 = vmatmul.mubr.bf16.gmra.mrb[0].mxu0 %v402
    %v438 = vpop.f32.mrb[0].mxu0
    %v439 = vadd.f32 %v376, %v438
    %v440 = vpop.f32.mrb[0].mxu0
    %v441 = vpop.f32.mrb[0].mxu0
    %v442 = vpop.f32.mrb[0].mxu0
    %443 = vdwg.mxu0
    %v444 = vadd.f32 %v360, %v439
    %v445 = vsel %vm78, %v444, 0.0
    %446 = vadd.xlane.f32.xlu0 %v445
    %v447 = vpop.xlane.xlu0 %446
    %v448 = vmul.f32 %v447, %v126
    %v449 = vsub.f32 %v444, %v448
    %v450 = vmul.f32 %v449, %v449
    %v451 = vsel %vm78, %v450, 0.0
    %452 = vadd.xlane.f32.xlu0 %v451
    %v453 = vpop.xlane.xlu0 %452
    %v454 = vmul.f32 %v453, %v126
    %v455 = vadd.f32 %v454, 1e-05
    %v456 = vrsqrt.pop %v455
    %v457 = vmul.f32 %v449, %v456
    %v458 = vlaneseq
    %v459 = vshrl.u32 %v458, 7
    %v460 = vsub.s32 1, %v459
    %v461 = vrot.slane %v362, %v460
    %v462 = vmul.f32 %v457, %v461
    %v463 = vlaneseq
    %v464 = vshrl.u32 %v463, 7
    %v465 = vsub.s32 2, %v464
    %v466 = vrot.slane %v362, %v465
    %v467 = vadd.f32 %v462, %v466
    %v468 = vpack.c.bf16 %v467, %v467
    %s469 = scalar_lea.vmem %s2, 32
    %v470 = vld [vmem:[%s469] sm:$0xf]
    %v471 = vld [vmem:[%s469 + $0x4] sm:$0xf]
    %v472 = vld [vmem:[%s469 + $0x8] sm:$0xf]
    %v473 = vld [vmem:[%s469 + $0xc] sm:$0xf]
    %v474 = vld [vmem:[%s469 + $0x10] sm:$0xf]
    %v475 = vld [vmem:[%s469 + $0x14] sm:$0xf]
    %v476 = vld [vmem:[%s469 + $0x18] sm:$0xf]
    %v477 = vld [vmem:[%s469 + $0x1c] sm:$0xf]
    %v478 = vlaneseq
    %v479 = vshrl.u32 %v478, 7
    %v480 = vsub.s32 3, %v479
    %v481 = vrot.slane %v362, %v480
    %v490 = vunpack.c.l.b16 %v470
    %v491 = vunpack.c.l.b16 %v471
    %v492 = vunpack.c.l.b16 %v472
    %v493 = vunpack.c.l.b16 %v473
    %v494 = vunpack.c.l.b16 %v474
    %v495 = vunpack.c.l.b16 %v475
    %v496 = vunpack.c.l.b16 %v476
    %v497 = vunpack.c.l.b16 %v477
    %v498 = vpack.c.b16 %v491, %v490
    %v499 = vpack.c.b16 %v493, %v492
    %v500 = vpack.c.b16 %v495, %v494
    %v501 = vpack.c.b16 %v497, %v496
    %v507 = vsel %vm78, %v468, 0
    %509 = vmatprep.subr.bf16.mxu0 0
    %510 = vmatpush1.bf16.msra.mxu0 %v498
    %511 = vmatprep.subr.bf16.mxu0 0
    %512 = vmatpush1.bf16.msra.mxu0 %v499
    %513 = vmatprep.subr.bf16.mxu0 0
    %514 = vmatpush1.bf16.msra.mxu0 %v500
    %515 = vmatprep.subr.bf16.mxu0 0
    %516 = vmatpush1.bf16.msra.mxu0 %v501
    %517 = vmatprep.subr.bf16.mxu0 0
    %518 = vmatpush1.bf16.msra.mxu0 0
    %519 = vmatprep.subr.bf16.mxu0 0
    %520 = vmatpush1.bf16.msra.mxu0 0
    %521 = vmatprep.subr.bf16.mxu0 0
    %522 = vmatpush1.bf16.msra.mxu0 0
    %523 = vmatprep.subr.bf16.mxu0 0
    %524 = vmatpush1.bf16.msra.mxu0 0
    %525 = vmatprep.subr.bf16.mxu0 0
    %526 = vmatpush1.bf16.msra.mxu0 0
    %527 = vmatprep.subr.bf16.mxu0 0
    %528 = vmatpush1.bf16.msra.mxu0 0
    %529 = vmatprep.subr.bf16.mxu0 0
    %530 = vmatpush1.bf16.msra.mxu0 0
    %531 = vmatprep.subr.bf16.mxu0 0
    %532 = vmatpush1.bf16.msra.mxu0 0
    %533 = vmatprep.subr.bf16.mxu0 0
    %534 = vmatpush1.bf16.msra.mxu0 0
    %535 = vmatprep.subr.bf16.mxu0 0
    %536 = vmatpush1.bf16.msra.mxu0 0
    %537 = vmatprep.subr.bf16.mxu0 0
    %538 = vmatpush1.bf16.msra.mxu0 0
    %539 = vmatprep.subr.bf16.mxu0 0
    %540 = vmatpush1.bf16.msra.mxu0 0
    %541 = vmatprep.mubr.bf16.mxu0 0
    %542 = vmatmul.mubr.bf16.gmra.mrb[0].mxu0 %v507
    %v543 = vpop.f32.mrb[0].mxu0
    %v544 = vadd.f32 %v481, %v543
    %v545 = vpop.f32.mrb[0].mxu0
    %v546 = vpop.f32.mrb[0].mxu0
    %v547 = vpop.f32.mrb[0].mxu0
    %548 = vdwg.mxu0
    %v549 = vmax.f32 %v544, 0.0
    %v550 = vpack.c.bf16 %v549, %v549
    %s551 = scalar_lea.vmem %s3, 64
    %v552 = vld [vmem:[%s551] sm:$0xf]
    %v553 = vld [vmem:[%s551 + $0x4] sm:$0xf]
    %v554 = vld [vmem:[%s551 + $0x8] sm:$0xf]
    %v555 = vld [vmem:[%s551 + $0xc] sm:$0xf]
    %v556 = vld [vmem:[%s551 + $0x10] sm:$0xf]
    %v557 = vld [vmem:[%s551 + $0x14] sm:$0xf]
    %v558 = vld [vmem:[%s551 + $0x18] sm:$0xf]
    %v559 = vld [vmem:[%s551 + $0x1c] sm:$0xf]
    %v560 = vld [vmem:[%s551 + $0x20] sm:$0xf]
    %v561 = vld [vmem:[%s551 + $0x24] sm:$0xf]
    %v562 = vld [vmem:[%s551 + $0x28] sm:$0xf]
    %v563 = vld [vmem:[%s551 + $0x2c] sm:$0xf]
    %v564 = vld [vmem:[%s551 + $0x30] sm:$0xf]
    %v565 = vld [vmem:[%s551 + $0x34] sm:$0xf]
    %v566 = vld [vmem:[%s551 + $0x38] sm:$0xf]
    %v567 = vld [vmem:[%s551 + $0x3c] sm:$0xf]
    %v568 = vlaneseq
    %v569 = vshrl.u32 %v568, 7
    %v570 = vsub.s32 4, %v569
    %v571 = vrot.slane %v362, %v570
    %v588 = vunpack.c.l.b16 %v552
    %v589 = vunpack.c.l.b16 %v553
    %v590 = vunpack.c.l.b16 %v554
    %v591 = vunpack.c.l.b16 %v555
    %v592 = vunpack.c.l.b16 %v556
    %v593 = vunpack.c.l.b16 %v557
    %v594 = vunpack.c.l.b16 %v558
    %v595 = vunpack.c.l.b16 %v559
    %v596 = vunpack.c.l.b16 %v560
    %v597 = vunpack.c.l.b16 %v561
    %v598 = vunpack.c.l.b16 %v562
    %v599 = vunpack.c.l.b16 %v563
    %v600 = vunpack.c.l.b16 %v564
    %v601 = vunpack.c.l.b16 %v565
    %v602 = vunpack.c.l.b16 %v566
    %v603 = vunpack.c.l.b16 %v567
    %v604 = vpack.c.b16 %v589, %v588
    %v605 = vpack.c.b16 %v591, %v590
    %v606 = vpack.c.b16 %v593, %v592
    %v607 = vpack.c.b16 %v595, %v594
    %v608 = vpack.c.b16 %v597, %v596
    %v609 = vpack.c.b16 %v599, %v598
    %v610 = vpack.c.b16 %v601, %v600
    %v611 = vpack.c.b16 %v603, %v602
    %620 = vmatprep.subr.bf16.mxu0 0
    %621 = vmatpush1.bf16.msra.mxu0 %v604
    %622 = vmatprep.subr.bf16.mxu0 0
    %623 = vmatpush1.bf16.msra.mxu0 %v605
    %624 = vmatprep.subr.bf16.mxu0 0
    %625 = vmatpush1.bf16.msra.mxu0 %v606
    %626 = vmatprep.subr.bf16.mxu0 0
    %627 = vmatpush1.bf16.msra.mxu0 %v607
    %628 = vmatprep.subr.bf16.mxu0 0
    %629 = vmatpush1.bf16.msra.mxu0 %v608
    %630 = vmatprep.subr.bf16.mxu0 0
    %631 = vmatpush1.bf16.msra.mxu0 %v609
    %632 = vmatprep.subr.bf16.mxu0 0
    %633 = vmatpush1.bf16.msra.mxu0 %v610
    %634 = vmatprep.subr.bf16.mxu0 0
    %635 = vmatpush1.bf16.msra.mxu0 %v611
    %636 = vmatprep.subr.bf16.mxu0 0
    %637 = vmatpush1.bf16.msra.mxu0 0
    %638 = vmatprep.subr.bf16.mxu0 0
    %639 = vmatpush1.bf16.msra.mxu0 0
    %640 = vmatprep.subr.bf16.mxu0 0
    %641 = vmatpush1.bf16.msra.mxu0 0
    %642 = vmatprep.subr.bf16.mxu0 0
    %643 = vmatpush1.bf16.msra.mxu0 0
    %644 = vmatprep.subr.bf16.mxu0 0
    %645 = vmatpush1.bf16.msra.mxu0 0
    %646 = vmatprep.subr.bf16.mxu0 0
    %647 = vmatpush1.bf16.msra.mxu0 0
    %648 = vmatprep.subr.bf16.mxu0 0
    %649 = vmatpush1.bf16.msra.mxu0 0
    %650 = vmatprep.subr.bf16.mxu0 0
    %651 = vmatpush1.bf16.msra.mxu0 0
    %652 = vmatprep.mubr.bf16.mxu0 0
    %653 = vmatmul.mubr.bf16.gmra.mrb[0].mxu0 %v550
    %v654 = vpop.f32.mrb[0].mxu0
    %v655 = vadd.f32 %v571, %v654
    %v656 = vpop.f32.mrb[0].mxu0
    %v657 = vpop.f32.mrb[0].mxu0
    %v658 = vpop.f32.mrb[0].mxu0
    %659 = vdwg.mxu0
    %v660 = vadd.f32 %v467, %v655
    %v661 = vsel %vm78, %v660, 0.0
    %662 = vadd.xlane.f32.xlu0 %v661
    %v663 = vpop.xlane.xlu0 %662
    %v664 = vmul.f32 %v663, %v126
    %v665 = vsub.f32 %v660, %v664
    %v666 = vmul.f32 %v665, %v665
    %v667 = vsel %vm78, %v666, 0.0
    %668 = vadd.xlane.f32.xlu0 %v667
    %v669 = vpop.xlane.xlu0 %668
    %v670 = vmul.f32 %v669, %v126
    %v671 = vadd.f32 %v670, 1e-05
    %v672 = vrsqrt.pop %v671
    %v673 = vmul.f32 %v665, %v672
    %v674 = vlaneseq
    %v675 = vshrl.u32 %v674, 7
    %v676 = vsub.s32 5, %v675
    %v677 = vrot.slane %v362, %v676
    %v678 = vmul.f32 %v673, %v677
    %v679 = vlaneseq
    %v680 = vshrl.u32 %v679, 7
    %v681 = vsub.s32 6, %v680
    %v682 = vrot.slane %v362, %v681
    %v683 = vadd.f32 %v678, %v682
    %v684 = vpack.c.bf16 %v683, %v683
    %v685 = vld [vmem:[%s5] sm:$0xf]
    %v686 = vld [vmem:[%s5 + $0x4] sm:$0xf]
    %v687 = vld [vmem:[%s5 + $0x8] sm:$0xf]
    %v688 = vld [vmem:[%s5 + $0xc] sm:$0xf]
    %v689 = vld [vmem:[%s5 + $0x10] sm:$0xf]
    %v690 = vld [vmem:[%s5 + $0x14] sm:$0xf]
    %v691 = vld [vmem:[%s5 + $0x18] sm:$0xf]
    %v692 = vld [vmem:[%s5 + $0x1c] sm:$0xf]
    %v693 = vlaneseq
    %v694 = vshrl.u32 %v693, 7
    %v695 = vsub.s32 0, %v694
    %v696 = vrot.slane %v32, %v695
    %v705 = vunpack.c.l.b16 %v685
    %v706 = vunpack.c.l.b16 %v686
    %v707 = vunpack.c.l.b16 %v687
    %v708 = vunpack.c.l.b16 %v688
    %v709 = vunpack.c.l.b16 %v689
    %v710 = vunpack.c.l.b16 %v690
    %v711 = vunpack.c.l.b16 %v691
    %v712 = vunpack.c.l.b16 %v692
    %v713 = vpack.c.b16 %v706, %v705
    %v714 = vpack.c.b16 %v708, %v707
    %v715 = vpack.c.b16 %v710, %v709
    %v716 = vpack.c.b16 %v712, %v711
    %v722 = vsel %vm78, %v684, 0
    %724 = vmatprep.subr.bf16.mxu0 0
    %725 = vmatpush1.bf16.msra.mxu0 %v713
    %726 = vmatprep.subr.bf16.mxu0 0
    %727 = vmatpush1.bf16.msra.mxu0 %v714
    %728 = vmatprep.subr.bf16.mxu0 0
    %729 = vmatpush1.bf16.msra.mxu0 %v715
    %730 = vmatprep.subr.bf16.mxu0 0
    %731 = vmatpush1.bf16.msra.mxu0 %v716
    %732 = vmatprep.subr.bf16.mxu0 0
    %733 = vmatpush1.bf16.msra.mxu0 0
    %734 = vmatprep.subr.bf16.mxu0 0
    %735 = vmatpush1.bf16.msra.mxu0 0
    %736 = vmatprep.subr.bf16.mxu0 0
    %737 = vmatpush1.bf16.msra.mxu0 0
    %738 = vmatprep.subr.bf16.mxu0 0
    %739 = vmatpush1.bf16.msra.mxu0 0
    %740 = vmatprep.subr.bf16.mxu0 0
    %741 = vmatpush1.bf16.msra.mxu0 0
    %742 = vmatprep.subr.bf16.mxu0 0
    %743 = vmatpush1.bf16.msra.mxu0 0
    %744 = vmatprep.subr.bf16.mxu0 0
    %745 = vmatpush1.bf16.msra.mxu0 0
    %746 = vmatprep.subr.bf16.mxu0 0
    %747 = vmatpush1.bf16.msra.mxu0 0
    %748 = vmatprep.subr.bf16.mxu0 0
    %749 = vmatpush1.bf16.msra.mxu0 0
    %750 = vmatprep.subr.bf16.mxu0 0
    %751 = vmatpush1.bf16.msra.mxu0 0
    %752 = vmatprep.subr.bf16.mxu0 0
    %753 = vmatpush1.bf16.msra.mxu0 0
    %754 = vmatprep.subr.bf16.mxu0 0
    %755 = vmatpush1.bf16.msra.mxu0 0
    %756 = vmatprep.mubr.bf16.mxu0 0
    %757 = vmatmul.mubr.bf16.gmra.mrb[0].mxu0 %v722
    %v758 = vpop.f32.mrb[0].mxu0
    %v759 = vadd.f32 %v696, %v758
    %v760 = vpop.f32.mrb[0].mxu0
    %v761 = vpop.f32.mrb[0].mxu0
    %v762 = vpop.f32.mrb[0].mxu0
    %763 = vdwg.mxu0
    %v764 = vmax.f32 %v759, 0.0
    %v765 = vpack.c.bf16 %v764, %v764
    %v766 = vld [vmem:[%s6] sm:$0xf]
    %v767 = vld [vmem:[%s6 + $0x4] sm:$0xf]
    %v768 = vld [vmem:[%s6 + $0x8] sm:$0xf]
    %v769 = vld [vmem:[%s6 + $0xc] sm:$0xf]
    %v770 = vld [vmem:[%s6 + $0x10] sm:$0xf]
    %v771 = vld [vmem:[%s6 + $0x14] sm:$0xf]
    %v772 = vld [vmem:[%s6 + $0x18] sm:$0xf]
    %v773 = vld [vmem:[%s6 + $0x1c] sm:$0xf]
    %v774 = vlaneseq
    %v775 = vshrl.u32 %v774, 7
    %v776 = vsub.s32 0, %v775
    %v777 = vrot.slane %v33, %v776
    %v786 = vunpack.c.l.b16 %v766
    %v787 = vunpack.c.l.b16 %v767
    %v788 = vunpack.c.l.b16 %v768
    %v789 = vunpack.c.l.b16 %v769
    %v790 = vunpack.c.l.b16 %v770
    %v791 = vunpack.c.l.b16 %v771
    %v792 = vunpack.c.l.b16 %v772
    %v793 = vunpack.c.l.b16 %v773
    %v794 = vpack.c.b16 %v787, %v786
    %v795 = vpack.c.b16 %v789, %v788
    %v796 = vpack.c.b16 %v791, %v790
    %v797 = vpack.c.b16 %v793, %v792
    %v803 = vsel %vm78, %v765, 0
    %805 = vmatprep.subr.bf16.mxu0 0
    %806 = vmatpush1.bf16.msra.mxu0 %v794
    %807 = vmatprep.subr.bf16.mxu0 0
    %808 = vmatpush1.bf16.msra.mxu0 %v795
    %809 = vmatprep.subr.bf16.mxu0 0
    %810 = vmatpush1.bf16.msra.mxu0 %v796
    %811 = vmatprep.subr.bf16.mxu0 0
    %812 = vmatpush1.bf16.msra.mxu0 %v797
    %813 = vmatprep.subr.bf16.mxu0 0
    %814 = vmatpush1.bf16.msra.mxu0 0
    %815 = vmatprep.subr.bf16.mxu0 0
    %816 = vmatpush1.bf16.msra.mxu0 0
    %817 = vmatprep.subr.bf16.mxu0 0
    %818 = vmatpush1.bf16.msra.mxu0 0
    %819 = vmatprep.subr.bf16.mxu0 0
    %820 = vmatpush1.bf16.msra.mxu0 0
    %821 = vmatprep.subr.bf16.mxu0 0
    %822 = vmatpush1.bf16.msra.mxu0 0
    %823 = vmatprep.subr.bf16.mxu0 0
    %824 = vmatpush1.bf16.msra.mxu0 0
    %825 = vmatprep.subr.bf16.mxu0 0
    %826 = vmatpush1.bf16.msra.mxu0 0
    %827 = vmatprep.subr.bf16.mxu0 0
    %828 = vmatpush1.bf16.msra.mxu0 0
    %829 = vmatprep.subr.bf16.mxu0 0
    %830 = vmatpush1.bf16.msra.mxu0 0
    %831 = vmatprep.subr.bf16.mxu0 0
    %832 = vmatpush1.bf16.msra.mxu0 0
    %833 = vmatprep.subr.bf16.mxu0 0
    %834 = vmatpush1.bf16.msra.mxu0 0
    %835 = vmatprep.subr.bf16.mxu0 0
    %836 = vmatpush1.bf16.msra.mxu0 0
    %837 = vmatprep.mubr.bf16.mxu0 0
    %838 = vmatmul.mubr.bf16.gmra.mrb[0].mxu0 %v803
    %v839 = vpop.f32.mrb[0].mxu0
    %v840 = vadd.f32 %v777, %v839
    %v841 = vpop.f32.mrb[0].mxu0
    %v842 = vpop.f32.mrb[0].mxu0
    %v843 = vpop.f32.mrb[0].mxu0
    %844 = vdwg.mxu0
    %vm845 = vcmask 64512
    %846 = vst.msk [vmem:[#allocation2] sm:$0xff] %vm845, %v840
    // Predicated region
    $region34: #{tpu_custom_call.1} parent=1 // pred_check
      _
    $region35: #{tpu_custom_call.1} parent=1 // pred_check_branch
      %848 = sbr.rel (0) target = $region37
    $region36: #{tpu_custom_call.1} parent=1 // pred_region
      %s850 = ssub.s32 128, 128
      %851 = vsyncadd [#allocation3], %s850
      %s853 = sshll.u32 [#allocation2], 4
      %s854 = int_to_ptr.vmem [resolvable:$true] %s853
      %856 = dma.vmem_to_hbm [thread:$0]  %s854, 128, %s8, [#allocation3]
    $region37: #{tpu_custom_call.1} parent=1 // pred_fallthru
      _
    // Predicated region
    $region38: #{tpu_custom_call.1} parent=1 // pred_check
      _
    $region39: #{tpu_custom_call.1} parent=1 // pred_check_branch
      %858 = sbr.rel (0) target = $region41
    $region40: #{tpu_custom_call.1} parent=1 // pred_region
      %859 = dma.done [#allocation3], 128
    $region41: #{tpu_custom_call.1} parent=1 // pred_fallthru
      _
    %860 = vsyncpa [#allocation3], 1

</llo_original>
